<compile_context>
chip_gen: v6e
topology: v6e:2x2x1
jax: 0.10.0
libtpu: 0.0.40
codegen_flags: <defaults>
</compile_context>

<pallas_src>
import functools

import jax
import jax.numpy as jnp
from jax.experimental import pallas as pl
from jax.experimental.pallas import tpu as pltpu


def _se_kernel(x_ref, w1t_ref, w2t_ref, y_ref, acc_ref, *,
               spatial_size, tile_spatial, lane_chunks, ragged):
    # x_ref : (tb, C, thw)   input tile, native dtype
    # w1t   : (C, hidden)    nn.Linear(C, C//r).weight transposed, f32
    # w2t   : (hidden, C)    nn.Linear(C//r, C).weight transposed, f32
    # y_ref : (tb, C)        gate output (resident across the spatial axis)
    # acc   : (tb, C, 128)   f32 lane-dense partial-sum accumulator (scratch)
    k = pl.program_id(1)

    @pl.when(k == 0)
    def _init():
        acc_ref[...] = jnp.zeros_like(acc_ref)

    x = x_ref[...].astype(jnp.float32)
    if ragged:
        # Mask out-of-range lanes of the (possibly) ragged last tile.  Padding
        # data in a boundary block is undefined, so select (not multiply) to 0.
        lane = jax.lax.broadcasted_iota(jnp.int32, (1, 1, tile_spatial), 2)
        valid = (k * tile_spatial + lane) < spatial_size
        x = jnp.where(valid, x, 0.0)

    # Accumulate with VPU adds over static 128-lane chunks (free vreg slices;
    # no relayout, no per-step cross-lane reduce).
    acc = acc_ref[...]
    for j in range(lane_chunks):
        acc = acc + x[:, :, j * 128:(j + 1) * 128]
    acc_ref[...] = acc

    @pl.when(k == pl.num_programs(1) - 1)
    def _finalize():
        # One cross-lane reduce per batch tile, then the tiny MLP + sigmoid.
        pooled = jnp.sum(acc_ref[...], axis=-1) * (1.0 / float(spatial_size))
        h = jnp.dot(pooled, w1t_ref[...], preferred_element_type=jnp.float32)
        h = jnp.maximum(h, 0.0)
        y = jnp.dot(h, w2t_ref[...], preferred_element_type=jnp.float32)
        y_ref[...] = jax.nn.sigmoid(y).astype(y_ref.dtype)


def se_attention_3d(x, w1, w2, *, tile_budget_bytes=4 * 1024 * 1024):
    """x: (B, C, D, H, W).  w1: (C//r, C), w2: (C, C//r) in PyTorch Linear layout.

    Returns the SE gate with shape (B, C, 1, 1, 1), matching the PyTorch forward.
    """
    B, C, D, H, W = x.shape
    hidden = w1.shape[0]
    assert w1.shape == (hidden, C) and w2.shape == (C, hidden)

    S = D * H * W
    itemsize = jnp.dtype(x.dtype).itemsize

    # Batch tile: output block (tb, C) needs tb % 8 == 0 or tb == B.
    if B > 8 and B % 8 == 0:
        tb = 8
    else:
        tb = B
    nb = B // tb

    # Spatial tile: multiple of 128, clamped to the (128-rounded) full extent
    # for small inputs, kept under the VMEM budget when double-buffered, and
    # capped so the unrolled in-kernel accumulation loop stays short.
    s_pad128 = ((S + 127) // 128) * 128
    max_thw = (tile_budget_bytes // max(1, tb * C * itemsize)) // 128 * 128
    max_thw = min(max(128, max_thw), 8192)
    thw = min(s_pad128, max_thw)
    ns = (S + thw - 1) // thw
    ragged = (S % thw) != 0

    x_flat = x.reshape(B, C, S)                 # free view (contiguous merge)
    w1_t = jnp.transpose(w1).astype(jnp.float32)   # (C, hidden)
    w2_t = jnp.transpose(w2).astype(jnp.float32)   # (hidden, C)

    kernel = functools.partial(
        _se_kernel,
        spatial_size=S,
        tile_spatial=thw,
        lane_chunks=thw // 128,
        ragged=ragged,
    )

    # VMEM estimate (double-buffered x tile + accumulator + weights + out).
    x_tile_bytes = tb * C * thw * itemsize
    vmem_need = (2 * x_tile_bytes
                 + tb * C * 128 * 4
                 + 2 * (C * hidden + hidden * C) * 4
                 + 2 * tb * C * 4)
    vmem_limit = int(min(32 * 1024 * 1024, max(2 * vmem_need, 4 * 1024 * 1024)))

    y = pl.pallas_call(
        kernel,
        out_shape=jax.ShapeDtypeStruct((B, C), x.dtype),
        grid_spec=pltpu.PrefetchScalarGridSpec(
            num_scalar_prefetch=0,
            grid=(nb, ns),
            in_specs=[
                pl.BlockSpec((tb, C, thw), lambda b, k: (b, 0, k)),
                pl.BlockSpec((C, hidden), lambda b, k: (0, 0)),   # weights resident
                pl.BlockSpec((hidden, C), lambda b, k: (0, 0)),
            ],
            out_specs=pl.BlockSpec((tb, C), lambda b, k: (b, 0)),  # resident over k
            scratch_shapes=[pltpu.VMEM((tb, C, 128), jnp.float32)],
        ),
        compiler_params=pltpu.CompilerParams(
            dimension_semantics=("parallel", "arbitrary"),
            vmem_limit_bytes=vmem_limit,
        ),
    )(x_flat, w1_t, w2_t)

    return y.reshape(B, C, 1, 1, 1)


def se_attention_3d_ref(x, w1, w2):
    """Pure-JAX reference mirroring the PyTorch forward (f32 math)."""
    B, C = x.shape[0], x.shape[1]
    pooled = jnp.mean(x.astype(jnp.float32), axis=(2, 3, 4))                 # (B, C)
    h = jnp.maximum(pooled @ w1.astype(jnp.float32).T, 0.0)                  # (B, C//r)
    y = jax.nn.sigmoid(h @ w2.astype(jnp.float32).T)                         # (B, C)
    return y.reshape(B, C, 1, 1, 1)


if __name__ == "__main__":
    root = jax.random.PRNGKey(0)

    def run_case(case_key, B, C, reduction, D, H, W, dtype, budget, atol):
        hidden = max(1, C // reduction)
        kx, k1, k2 = jax.random.split(case_key, 3)
        x = jax.random.normal(kx, (B, C, D, H, W), dtype=jnp.float32).astype(dtype)
        w1 = jax.random.normal(k1, (hidden, C), dtype=jnp.float32) * 0.1
        w2 = jax.random.normal(k2, (C, hidden), dtype=jnp.float32) * 0.1

        out = se_attention_3d(x, w1, w2, tile_budget_bytes=budget)
        out = jax.block_until_ready(out)
        ref = se_attention_3d_ref(x, w1, w2)

        assert out.shape == (B, C, 1, 1, 1)
        assert jnp.allclose(out.astype(jnp.float32), ref, atol=atol, rtol=1e-3), (
            "mismatch vs reference")

    keys = jax.random.split(root, 3)

    # Case 1: small, non-128-multiple spatial (exercises ragged-tile masking), f32.
    run_case(keys[0], B=2, C=64, reduction=16, D=3, H=7, W=9,
             dtype=jnp.float32, budget=4 * 1024 * 1024, atol=2e-5)

    # Case 2: multi-tile spatial reduction (tiny budget forces several spatial
    # steps with a ragged tail), odd batch, f32.
    run_case(keys[1], B=3, C=32, reduction=16, D=3, H=10, W=10,
             dtype=jnp.float32, budget=64 * 1024, atol=2e-5)

    # Case 3: bf16 activations streamed in native dtype, accumulated in f32.
    run_case(keys[2], B=2, C=64, reduction=16, D=4, H=8, W=8,
             dtype=jnp.bfloat16, budget=4 * 1024 * 1024, atol=1e-2)

    print("KERNEL_OK")
</pallas_src>

<mosaic_0001>
module attributes {stable_mosaic.version = 11 : i64} {
  func.func @_se_kernel(%arg0: i32, %arg1: i32, %arg2: memref<2x64x256xf32, #tpu.memory_space<vmem>>, %arg3: memref<64x4xf32, #tpu.memory_space<vmem>>, %arg4: memref<4x64xf32, #tpu.memory_space<vmem>>, %arg5: memref<2x64xf32, #tpu.memory_space<vmem>>, %arg6: memref<2x64x128xf32, #tpu.memory_space<vmem>>) attributes {dimension_semantics = [#tpu.dimension_semantics<parallel>, #tpu.dimension_semantics<arbitrary>], iteration_bounds = array<i64: 1, 1>, scalar_prefetch = 0 : i64, scratch_operands = 1 : i64, tpu.core_type = #tpu.core_type<tc>, window_params = [{transform_indices = @transform_0, window_bounds = array<i64: 2, 64, 256>}, {pipeline_mode = #tpu.pipeline_mode<synchronous>, transform_indices = @transform_1, window_bounds = array<i64: 64, 4>}, {pipeline_mode = #tpu.pipeline_mode<synchronous>, transform_indices = @transform_2, window_bounds = array<i64: 4, 64>}, {transform_indices = @transform_3, window_bounds = array<i64: 2, 64>}]} {
    %c0_i32 = arith.constant 0 : i32
    %0 = arith.cmpi eq, %arg1, %c0_i32 : i32
    %1 = arith.extui %0 : i1 to i32
    %c0_i32_0 = arith.constant 0 : i32
    %2 = arith.cmpi ne, %1, %c0_i32_0 : i32
    scf.if %2 {
      %cst_11 = arith.constant 0.000000e+00 : f32
      %23 = vector.broadcast %cst_11 : f32 to vector<2x64x128xf32>
      %c0_12 = arith.constant 0 : index
      %c0_13 = arith.constant 0 : index
      %c0_14 = arith.constant 0 : index
      %24 = vector.load %arg6[%c0_12, %c0_13, %c0_14] : memref<2x64x128xf32, #tpu.memory_space<vmem>>, vector<2x64x128xf32>
      tpu.vector_store %arg6[%c0_12, %c0_13, %c0_14], %23 {strides = array<i32>} : memref<2x64x128xf32, #tpu.memory_space<vmem>>, vector<2x64x128xf32>,
    } else {
    }
    %c0 = arith.constant 0 : index
    %c0_1 = arith.constant 0 : index
    %c0_2 = arith.constant 0 : index
    %3 = vector.load %arg2[%c0, %c0_1, %c0_2] : memref<2x64x256xf32, #tpu.memory_space<vmem>>, vector<2x64x256xf32>
    %4 = tpu.iota {dimensions = array<i32: 2>} : vector<1x1x256xi32>
    %c256_i32 = arith.constant 256 : i32
    %5 = arith.muli %arg1, %c256_i32 : i32
    %6 = vector.broadcast %5 : i32 to vector<1x1x256xi32>
    %7 = arith.addi %6, %4 : vector<1x1x256xi32>
    %c189_i32 = arith.constant 189 : i32
    %8 = vector.broadcast %c189_i32 : i32 to vector<1x1x256xi32>
    %9 = arith.cmpi slt, %7, %8 : vector<1x1x256xi32>
    %cst = arith.constant 0.000000e+00 : f32
    %10 = vector.shape_cast %9 : vector<1x1x256xi1> to vector<1x1x256xi1>
    %11 = vector.broadcast %10 : vector<1x1x256xi1> to vector<2x64x256xi1>
    %12 = vector.broadcast %cst : f32 to vector<2x64x256xf32>
    %13 = arith.select %11, %3, %12 : vector<2x64x256xi1>, vector<2x64x256xf32>
    %c0_3 = arith.constant 0 : index
    %c0_4 = arith.constant 0 : index
    %c0_5 = arith.constant 0 : index
    %14 = vector.load %arg6[%c0_3, %c0_4, %c0_5] : memref<2x64x128xf32, #tpu.memory_space<vmem>>, vector<2x64x128xf32>
    %15 = vector.extract_strided_slice %13 {offsets = [0, 0, 0], sizes = [2, 64, 128], strides = [1, 1, 1]} : vector<2x64x256xf32> to vector<2x64x128xf32>
    %16 = arith.addf %14, %15 : vector<2x64x128xf32>
    %17 = vector.extract_strided_slice %13 {offsets = [0, 0, 128], sizes = [2, 64, 128], strides = [1, 1, 1]} : vector<2x64x256xf32> to vector<2x64x128xf32>
    %18 = arith.addf %16, %17 : vector<2x64x128xf32>
    %c0_6 = arith.constant 0 : index
    %c0_7 = arith.constant 0 : index
    %c0_8 = arith.constant 0 : index
    %19 = vector.load %arg6[%c0_6, %c0_7, %c0_8] : memref<2x64x128xf32, #tpu.memory_space<vmem>>, vector<2x64x128xf32>
    tpu.vector_store %arg6[%c0_6, %c0_7, %c0_8], %18 {strides = array<i32>} : memref<2x64x128xf32, #tpu.memory_space<vmem>>, vector<2x64x128xf32>,
    %c0_i32_9 = arith.constant 0 : i32
    %20 = arith.cmpi eq, %arg1, %c0_i32_9 : i32
    %21 = arith.extui %20 : i1 to i32
    %c0_i32_10 = arith.constant 0 : i32
    %22 = arith.cmpi ne, %21, %c0_i32_10 : i32
    scf.if %22 {
      %c0_11 = arith.constant 0 : index
      %c0_12 = arith.constant 0 : index
      %c0_13 = arith.constant 0 : index
      %23 = vector.load %arg6[%c0_11, %c0_12, %c0_13] : memref<2x64x128xf32, #tpu.memory_space<vmem>>, vector<2x64x128xf32>
      %cst_14 = arith.constant dense<0.000000e+00> : vector<2x64xf32>
      %24 = vector.multi_reduction <add>, %23, %cst_14 [2] : vector<2x64x128xf32> to vector<2x64xf32>
      %cst_15 = arith.constant 0.00529100513 : f32
      %25 = vector.broadcast %cst_15 : f32 to vector<2x64xf32>
      %26 = arith.mulf %24, %25 : vector<2x64xf32>
      %c0_16 = arith.constant 0 : index
      %c0_17 = arith.constant 0 : index
      %27 = vector.load %arg3[%c0_16, %c0_17] : memref<64x4xf32, #tpu.memory_space<vmem>>, vector<64x4xf32>
      %cst_18 = arith.constant dense<0.000000e+00> : vector<2x4xf32>
      %28 = tpu.matmul %26, %27, %cst_18 {dimension_numbers = #tpu.dot_dimension_numbers<[1], [0], [0], [1], [0, 0, 1, 1], [], []>} : vector<2x64xf32>, vector<64x4xf32>, vector<2x4xf32> -> vector<2x4xf32>
      %cst_19 = arith.constant 0.000000e+00 : f32
      %29 = vector.broadcast %cst_19 : f32 to vector<2x4xf32>
      %30 = arith.maximumf %28, %29 : vector<2x4xf32>
      %c0_20 = arith.constant 0 : index
      %c0_21 = arith.constant 0 : index
      %31 = vector.load %arg4[%c0_20, %c0_21] : memref<4x64xf32, #tpu.memory_space<vmem>>, vector<4x64xf32>
      %cst_22 = arith.constant dense<0.000000e+00> : vector<2x64xf32>
      %32 = tpu.matmul %30, %31, %cst_22 {dimension_numbers = #tpu.dot_dimension_numbers<[1], [0], [0], [1], [0, 0, 1, 1], [], []>} : vector<2x4xf32>, vector<4x64xf32>, vector<2x64xf32> -> vector<2x64xf32>
      %33 = arith.negf %32 : vector<2x64xf32>
      %34 = math.exp %33 : vector<2x64xf32>
      %cst_23 = arith.constant 1.000000e+00 : f32
      %35 = vector.broadcast %cst_23 : f32 to vector<2x64xf32>
      %36 = arith.addf %35, %34 : vector<2x64xf32>
      %37 = arith.divf %35, %36 : vector<2x64xf32>
      %c0_24 = arith.constant 0 : index
      %c0_25 = arith.constant 0 : index
      %38 = vector.load %arg5[%c0_24, %c0_25] : memref<2x64xf32, #tpu.memory_space<vmem>>, vector<2x64xf32>
      tpu.vector_store %arg5[%c0_24, %c0_25], %37 {strides = array<i32>} : memref<2x64xf32, #tpu.memory_space<vmem>>, vector<2x64xf32>,
    } else {
    }
    return
  }
  func.func @transform_0(%arg0: i32, %arg1: i32) -> (i32, i32, i32) {
    %c0_i32 = arith.constant 0 : i32
    %c0_i32_0 = arith.constant 0 : i32
    return %arg0, %c0_i32, %arg1 : i32, i32, i32
  }
  func.func @transform_1(%arg0: i32, %arg1: i32) -> (i32, i32) {
    %c0_i32 = arith.constant 0 : i32
    %c0_i32_0 = arith.constant 0 : i32
    %c0_i32_1 = arith.constant 0 : i32
    return %c0_i32, %c0_i32_0 : i32, i32
  }
  func.func @transform_2(%arg0: i32, %arg1: i32) -> (i32, i32) {
    %c0_i32 = arith.constant 0 : i32
    %c0_i32_0 = arith.constant 0 : i32
    %c0_i32_1 = arith.constant 0 : i32
    return %c0_i32, %c0_i32_0 : i32, i32
  }
  func.func @transform_3(%arg0: i32, %arg1: i32) -> (i32, i32) {
    %c0_i32 = arith.constant 0 : i32
    %c0_i32_0 = arith.constant 0 : i32
    return %arg0, %c0_i32 : i32, i32
  }
}

</mosaic_0001>

<llo_original>
// kernel: tpu_custom_call.1
$region0: #{tpu_custom_call.1}
  #allocation0 [shape = 'u32[]', space=smem, size = 0x4, offset = 0x4, fixed_abs, tag = 'smem constant byte address 0x4 - core index']
  #allocation1 [shape = 'u32[144,128]{1,0:T(1,128)}', space=vmem, size = 0x12000, scoped, tag = 'internal scratch']
  #allocation2 [shape = 'f32[2,64,128]{2,1,0:T(8,128)}', space=vmem, size = 0x10000, scoped, tag = 'scratch operand']
  %s0 = inlined_call_operand.hbm [shape: f32[2,64,189], index: 0, kind: input, shape index: {}]
  %s1 = inlined_call_operand.vmem [shape: f32[64,4], index: 1, kind: input, shape index: {}]
  %s2 = inlined_call_operand.vmem [shape: f32[4,64], index: 2, kind: input, shape index: {}]
  %s3 = inlined_call_operand.hbm [shape: f32[2,64], index: 3, kind: output, shape index: {}]
  %s4 = sld [smem:[#allocation0]]
  $region34: #{tpu_custom_call.1} parent=0
    _
  %s6 = ssub.s32 1, %s4
  %s7 = scalar_select 0, %s6, %s4
  $region1: #{tpu_custom_call.1} parent=0
    #allocation3 [shape = 'u8[131072]{0}', space=vmem, size = 0x20000, scoped, tag = 'input window, operand 0, single buffered']
    #allocation4 [shape = 's32[1]{0}', space=sflag, size = 0x4, scoped, tag = 'scoped memory for tpu_custom_call.1']
    #allocation5 [shape = 's32[1]{0}', space=sflag, size = 0x4, scoped, tag = 'scoped memory for tpu_custom_call.1']
    #allocation6 [shape = 'u8[1024]{0}', space=vmem, size = 0x400, scoped, tag = 'output window, operand 0, single buffered']
    %8 = vsyncpa [#allocation4], 0
    %9 = vsyncpa [#allocation5], 0
    // Predicated region
    $region2: #{tpu_custom_call.1} parent=1 // pred_check
      _
    $region3: #{tpu_custom_call.1} parent=1 // pred_check_branch
      %11 = sbr.rel (0) target = $region5
    $region4: #{tpu_custom_call.1} parent=1 // pred_region
      %s13 = ssub.s32 4096, 4096
      %14 = vsyncadd [#allocation4], %s13
      %s15 = sshll.u32 [#allocation3], 4
      %s16 = int_to_ptr.vmem [resolvable:$true] %s15
      %21 = dma.hbm_to_vmem [thread:$0]  %s0, 4096, %s16, [#allocation4], 256, 256, 16
    $region5: #{tpu_custom_call.1} parent=1 // pred_fallthru
      _
    // Predicated region
    $region6: #{tpu_custom_call.1} parent=1 // pred_check
      _
    $region7: #{tpu_custom_call.1} parent=1 // pred_check_branch
      %23 = sbr.rel (0) target = $region9
    $region8: #{tpu_custom_call.1} parent=1 // pred_region
      _
    $region9: #{tpu_custom_call.1} parent=1 // pred_fallthru
      _
    // Predicated region
    $region10: #{tpu_custom_call.1} parent=1 // pred_check
      _
    $region11: #{tpu_custom_call.1} parent=1 // pred_check_branch
      %25 = sbr.rel (0) target = $region13
    $region12: #{tpu_custom_call.1} parent=1 // pred_region
      _
    $region13: #{tpu_custom_call.1} parent=1 // pred_fallthru
      _
    // Predicated region
    $region14: #{tpu_custom_call.1} parent=1 // pred_check
      _
    $region15: #{tpu_custom_call.1} parent=1 // pred_check_branch
      %27 = sbr.rel (0) target = $region17
    $region16: #{tpu_custom_call.1} parent=1 // pred_region
      %28 = dma.done [#allocation4], 4096
    $region17: #{tpu_custom_call.1} parent=1 // pred_fallthru
      _
    %p29 = scmp.eq.s32.totalorder 0, 0
    // Predicated region
    $region18: #{tpu_custom_call.1} parent=1 // pred_check
      %p30 = pneg %p29
    $region19: #{tpu_custom_call.1} parent=1 // pred_check_branch
      %32 = sbr.rel (%p30) target = $region21
    $region20: #{tpu_custom_call.1} parent=1 // pred_region
      %33 = vst [vmem:[#allocation2] sm:$0xff] 0.0
      %34 = vst [vmem:[#allocation2 + $0x8] sm:$0xff] 0.0
      %35 = vst [vmem:[#allocation2 + $0x10] sm:$0xff] 0.0
      %36 = vst [vmem:[#allocation2 + $0x18] sm:$0xff] 0.0
      %37 = vst [vmem:[#allocation2 + $0x20] sm:$0xff] 0.0
      %38 = vst [vmem:[#allocation2 + $0x28] sm:$0xff] 0.0
      %39 = vst [vmem:[#allocation2 + $0x30] sm:$0xff] 0.0
      %40 = vst [vmem:[#allocation2 + $0x38] sm:$0xff] 0.0
      %41 = vst [vmem:[#allocation2 + $0x40] sm:$0xff] 0.0
      %42 = vst [vmem:[#allocation2 + $0x48] sm:$0xff] 0.0
      %43 = vst [vmem:[#allocation2 + $0x50] sm:$0xff] 0.0
      %44 = vst [vmem:[#allocation2 + $0x58] sm:$0xff] 0.0
      %45 = vst [vmem:[#allocation2 + $0x60] sm:$0xff] 0.0
      %46 = vst [vmem:[#allocation2 + $0x68] sm:$0xff] 0.0
      %47 = vst [vmem:[#allocation2 + $0x70] sm:$0xff] 0.0
      %48 = vst [vmem:[#allocation2 + $0x78] sm:$0xff] 0.0
    $region21: #{tpu_custom_call.1} parent=1 // pred_fallthru
      _
    %v49 = vld [vmem:[#allocation3] sm:$0xff]
    %v50 = vld [vmem:[#allocation3 + $0x8] sm:$0xff]
    %v51 = vld [vmem:[#allocation3 + $0x10] sm:$0xff]
    %v52 = vld [vmem:[#allocation3 + $0x18] sm:$0xff]
    %v53 = vld [vmem:[#allocation3 + $0x20] sm:$0xff]
    %v54 = vld [vmem:[#allocation3 + $0x28] sm:$0xff]
    %v55 = vld [vmem:[#allocation3 + $0x30] sm:$0xff]
    %v56 = vld [vmem:[#allocation3 + $0x38] sm:$0xff]
    %v57 = vld [vmem:[#allocation3 + $0x40] sm:$0xff]
    %v58 = vld [vmem:[#allocation3 + $0x48] sm:$0xff]
    %v59 = vld [vmem:[#allocation3 + $0x50] sm:$0xff]
    %v60 = vld [vmem:[#allocation3 + $0x58] sm:$0xff]
    %v61 = vld [vmem:[#allocation3 + $0x60] sm:$0xff]
    %v62 = vld [vmem:[#allocation3 + $0x68] sm:$0xff]
    %v63 = vld [vmem:[#allocation3 + $0x70] sm:$0xff]
    %v64 = vld [vmem:[#allocation3 + $0x78] sm:$0xff]
    %v65 = vld [vmem:[#allocation3 + $0x80] sm:$0xff]
    %v66 = vld [vmem:[#allocation3 + $0x88] sm:$0xff]
    %v67 = vld [vmem:[#allocation3 + $0x90] sm:$0xff]
    %v68 = vld [vmem:[#allocation3 + $0x98] sm:$0xff]
    %v69 = vld [vmem:[#allocation3 + $0xa0] sm:$0xff]
    %v70 = vld [vmem:[#allocation3 + $0xa8] sm:$0xff]
    %v71 = vld [vmem:[#allocation3 + $0xb0] sm:$0xff]
    %v72 = vld [vmem:[#allocation3 + $0xb8] sm:$0xff]
    %v73 = vld [vmem:[#allocation3 + $0xc0] sm:$0xff]
    %v74 = vld [vmem:[#allocation3 + $0xc8] sm:$0xff]
    %v75 = vld [vmem:[#allocation3 + $0xd0] sm:$0xff]
    %v76 = vld [vmem:[#allocation3 + $0xd8] sm:$0xff]
    %v77 = vld [vmem:[#allocation3 + $0xe0] sm:$0xff]
    %v78 = vld [vmem:[#allocation3 + $0xe8] sm:$0xff]
    %v79 = vld [vmem:[#allocation3 + $0xf0] sm:$0xff]
    %v80 = vld [vmem:[#allocation3 + $0xf8] sm:$0xff]
    %v81 = vlaneseq
    %v82 = vand.u32 %v81, 127
    %v83 = vadd.s32 %v82, 128
    %s84 = smul.u32 0, 256
    %v85 = vstv %s84
    %v86 = vadd.s32 %v85, %v82
    %v87 = vadd.s32 %v85, %v83
    %vm88 = vcmp.lt.s32.totalorder %v86, 189
    %vm89 = vcmp.lt.s32.totalorder %v87, 189
    %v90 = vsel %vm88, 1, 0
    %v91 = vsel %vm89, 1, 0
    %vm92 = vcmp.eq.s32.totalorder %v90, 1
    %vm93 = vcmp.eq.s32.totalorder %v91, 1
    %v94 = vsel %vm92, %v49, 0.0
    %v95 = vsel %vm93, %v50, 0.0
    %v96 = vsel %vm92, %v51, 0.0
    %v97 = vsel %vm93, %v52, 0.0
    %v98 = vsel %vm92, %v53, 0.0
    %v99 = vsel %vm93, %v54, 0.0
    %v100 = vsel %vm92, %v55, 0.0
    %v101 = vsel %vm93, %v56, 0.0
    %v102 = vsel %vm92, %v57, 0.0
    %v103 = vsel %vm93, %v58, 0.0
    %v104 = vsel %vm92, %v59, 0.0
    %v105 = vsel %vm93, %v60, 0.0
    %v106 = vsel %vm92, %v61, 0.0
    %v107 = vsel %vm93, %v62, 0.0
    %v108 = vsel %vm92, %v63, 0.0
    %v109 = vsel %vm93, %v64, 0.0
    %v110 = vsel %vm92, %v65, 0.0
    %v111 = vsel %vm93, %v66, 0.0
    %v112 = vsel %vm92, %v67, 0.0
    %v113 = vsel %vm93, %v68, 0.0
    %v114 = vsel %vm92, %v69, 0.0
    %v115 = vsel %vm93, %v70, 0.0
    %v116 = vsel %vm92, %v71, 0.0
    %v117 = vsel %vm93, %v72, 0.0
    %v118 = vsel %vm92, %v73, 0.0
    %v119 = vsel %vm93, %v74, 0.0
    %v120 = vsel %vm92, %v75, 0.0
    %v121 = vsel %vm93, %v76, 0.0
    %v122 = vsel %vm92, %v77, 0.0
    %v123 = vsel %vm93, %v78, 0.0
    %v124 = vsel %vm92, %v79, 0.0
    %v125 = vsel %vm93, %v80, 0.0
    %v126 = vld [vmem:[#allocation2] sm:$0xff]
    %v127 = vld [vmem:[#allocation2 + $0x8] sm:$0xff]
    %v128 = vld [vmem:[#allocation2 + $0x10] sm:$0xff]
    %v129 = vld [vmem:[#allocation2 + $0x18] sm:$0xff]
    %v130 = vld [vmem:[#allocation2 + $0x20] sm:$0xff]
    %v131 = vld [vmem:[#allocation2 + $0x28] sm:$0xff]
    %v132 = vld [vmem:[#allocation2 + $0x30] sm:$0xff]
    %v133 = vld [vmem:[#allocation2 + $0x38] sm:$0xff]
    %v134 = vld [vmem:[#allocation2 + $0x40] sm:$0xff]
    %v135 = vld [vmem:[#allocation2 + $0x48] sm:$0xff]
    %v136 = vld [vmem:[#allocation2 + $0x50] sm:$0xff]
    %v137 = vld [vmem:[#allocation2 + $0x58] sm:$0xff]
    %v138 = vld [vmem:[#allocation2 + $0x60] sm:$0xff]
    %v139 = vld [vmem:[#allocation2 + $0x68] sm:$0xff]
    %v140 = vld [vmem:[#allocation2 + $0x70] sm:$0xff]
    %v141 = vld [vmem:[#allocation2 + $0x78] sm:$0xff]
    %v142 = vadd.f32 %v126, %v94
    %v143 = vadd.f32 %v127, %v96
    %v144 = vadd.f32 %v128, %v98
    %v145 = vadd.f32 %v129, %v100
    %v146 = vadd.f32 %v130, %v102
    %v147 = vadd.f32 %v131, %v104
    %v148 = vadd.f32 %v132, %v106
    %v149 = vadd.f32 %v133, %v108
    %v150 = vadd.f32 %v134, %v110
    %v151 = vadd.f32 %v135, %v112
    %v152 = vadd.f32 %v136, %v114
    %v153 = vadd.f32 %v137, %v116
    %v154 = vadd.f32 %v138, %v118
    %v155 = vadd.f32 %v139, %v120
    %v156 = vadd.f32 %v140, %v122
    %v157 = vadd.f32 %v141, %v124
    %v158 = vadd.f32 %v142, %v95
    %v159 = vadd.f32 %v143, %v97
    %v160 = vadd.f32 %v144, %v99
    %v161 = vadd.f32 %v145, %v101
    %v162 = vadd.f32 %v146, %v103
    %v163 = vadd.f32 %v147, %v105
    %v164 = vadd.f32 %v148, %v107
    %v165 = vadd.f32 %v149, %v109
    %v166 = vadd.f32 %v150, %v111
    %v167 = vadd.f32 %v151, %v113
    %v168 = vadd.f32 %v152, %v115
    %v169 = vadd.f32 %v153, %v117
    %v170 = vadd.f32 %v154, %v119
    %v171 = vadd.f32 %v155, %v121
    %v172 = vadd.f32 %v156, %v123
    %v173 = vadd.f32 %v157, %v125
    %174 = vst [vmem:[#allocation2] sm:$0xff] %v158
    %175 = vst [vmem:[#allocation2 + $0x8] sm:$0xff] %v159
    %176 = vst [vmem:[#allocation2 + $0x10] sm:$0xff] %v160
    %177 = vst [vmem:[#allocation2 + $0x18] sm:$0xff] %v161
    %178 = vst [vmem:[#allocation2 + $0x20] sm:$0xff] %v162
    %179 = vst [vmem:[#allocation2 + $0x28] sm:$0xff] %v163
    %180 = vst [vmem:[#allocation2 + $0x30] sm:$0xff] %v164
    %181 = vst [vmem:[#allocation2 + $0x38] sm:$0xff] %v165
    %182 = vst [vmem:[#allocation2 + $0x40] sm:$0xff] %v166
    %183 = vst [vmem:[#allocation2 + $0x48] sm:$0xff] %v167
    %184 = vst [vmem:[#allocation2 + $0x50] sm:$0xff] %v168
    %185 = vst [vmem:[#allocation2 + $0x58] sm:$0xff] %v169
    %186 = vst [vmem:[#allocation2 + $0x60] sm:$0xff] %v170
    %187 = vst [vmem:[#allocation2 + $0x68] sm:$0xff] %v171
    %188 = vst [vmem:[#allocation2 + $0x70] sm:$0xff] %v172
    %189 = vst [vmem:[#allocation2 + $0x78] sm:$0xff] %v173
    // Predicated region
    $region22: #{tpu_custom_call.1} parent=1 // pred_check
      %p190 = pneg %p29
    $region23: #{tpu_custom_call.1} parent=1 // pred_check_branch
      %192 = sbr.rel (%p190) target = $region25
    $region24: #{tpu_custom_call.1} parent=1 // pred_region
      %v193 = vld [vmem:[#allocation2] sm:$0xff]
      %v194 = vld [vmem:[#allocation2 + $0x8] sm:$0xff]
      %v195 = vld [vmem:[#allocation2 + $0x10] sm:$0xff]
      %v196 = vld [vmem:[#allocation2 + $0x18] sm:$0xff]
      %v197 = vld [vmem:[#allocation2 + $0x20] sm:$0xff]
      %v198 = vld [vmem:[#allocation2 + $0x28] sm:$0xff]
      %v199 = vld [vmem:[#allocation2 + $0x30] sm:$0xff]
      %v200 = vld [vmem:[#allocation2 + $0x38] sm:$0xff]
      %v201 = vld [vmem:[#allocation2 + $0x40] sm:$0xff]
      %v202 = vld [vmem:[#allocation2 + $0x48] sm:$0xff]
      %v203 = vld [vmem:[#allocation2 + $0x50] sm:$0xff]
      %v204 = vld [vmem:[#allocation2 + $0x58] sm:$0xff]
      %v205 = vld [vmem:[#allocation2 + $0x60] sm:$0xff]
      %v206 = vld [vmem:[#allocation2 + $0x68] sm:$0xff]
      %v207 = vld [vmem:[#allocation2 + $0x70] sm:$0xff]
      %v208 = vld [vmem:[#allocation2 + $0x78] sm:$0xff]
      %209 = vadd.xlane.f32.xlu0 %v193
      %v210 = vpop.xlane.xlu0 %209
      %211 = vadd.xlane.f32.xlu0 %v194
      %v212 = vpop.xlane.xlu0 %211
      %213 = vadd.xlane.f32.xlu0 %v195
      %v214 = vpop.xlane.xlu0 %213
      %215 = vadd.xlane.f32.xlu0 %v196
      %v216 = vpop.xlane.xlu0 %215
      %217 = vadd.xlane.f32.xlu0 %v197
      %v218 = vpop.xlane.xlu0 %217
      %219 = vadd.xlane.f32.xlu0 %v198
      %v220 = vpop.xlane.xlu0 %219
      %221 = vadd.xlane.f32.xlu0 %v199
      %v222 = vpop.xlane.xlu0 %221
      %223 = vadd.xlane.f32.xlu0 %v200
      %v224 = vpop.xlane.xlu0 %223
      %225 = vadd.xlane.f32.xlu0 %v201
      %v226 = vpop.xlane.xlu0 %225
      %227 = vadd.xlane.f32.xlu0 %v202
      %v228 = vpop.xlane.xlu0 %227
      %229 = vadd.xlane.f32.xlu0 %v203
      %v230 = vpop.xlane.xlu0 %229
      %231 = vadd.xlane.f32.xlu0 %v204
      %v232 = vpop.xlane.xlu0 %231
      %233 = vadd.xlane.f32.xlu0 %v205
      %v234 = vpop.xlane.xlu0 %233
      %235 = vadd.xlane.f32.xlu0 %v206
      %v236 = vpop.xlane.xlu0 %235
      %237 = vadd.xlane.f32.xlu0 %v207
      %v238 = vpop.xlane.xlu0 %237
      %239 = vadd.xlane.f32.xlu0 %v208
      %v240 = vpop.xlane.xlu0 %239
      %v241 = vmul.f32 %v210, 0.005291005
      %v242 = vmul.f32 %v212, 0.005291005
      %v243 = vmul.f32 %v214, 0.005291005
      %v244 = vmul.f32 %v216, 0.005291005
      %v245 = vmul.f32 %v218, 0.005291005
      %v246 = vmul.f32 %v220, 0.005291005
      %v247 = vmul.f32 %v222, 0.005291005
      %v248 = vmul.f32 %v224, 0.005291005
      %v249 = vmul.f32 %v226, 0.005291005
      %v250 = vmul.f32 %v228, 0.005291005
      %v251 = vmul.f32 %v230, 0.005291005
      %v252 = vmul.f32 %v232, 0.005291005
      %v253 = vmul.f32 %v234, 0.005291005
      %v254 = vmul.f32 %v236, 0.005291005
      %v255 = vmul.f32 %v238, 0.005291005
      %v256 = vmul.f32 %v240, 0.005291005
      %v257 = vld [vmem:[%s1] sm:$0xff]
      %v258 = vld [vmem:[%s1 + $0x8] sm:$0xff]
      %v259 = vld [vmem:[%s1 + $0x10] sm:$0xff]
      %v260 = vld [vmem:[%s1 + $0x18] sm:$0xff]
      %v261 = vld [vmem:[%s1 + $0x20] sm:$0xff]
      %v262 = vld [vmem:[%s1 + $0x28] sm:$0xff]
      %v263 = vld [vmem:[%s1 + $0x30] sm:$0xff]
      %v264 = vld [vmem:[%s1 + $0x38] sm:$0xff]
      %v281 = vlaneseq
      %v282 = vshrl.u32 %v281, 7
      %v283 = vsub.s32 %v82, %v282
      %v284 = vrot.slane %v241, %v283
      %v285 = vadd.s32 %v82, 4294967288
      %v286 = vlaneseq
      %v287 = vshrl.u32 %v286, 7
      %v288 = vsub.s32 %v285, %v287
      %v289 = vrot.slane %v242, %v288
      %vm290 = vcmask 130112
      %v291 = vsel %vm290, %v289, %v284
      %v292 = vadd.s32 %v82, 4294967280
      %v293 = vlaneseq
      %v294 = vshrl.u32 %v293, 7
      %v295 = vsub.s32 %v292, %v294
      %v296 = vrot.slane %v243, %v295
      %vm297 = vcmask 195712
      %v298 = vsel %vm297, %v296, %v291
      %v299 = vadd.s32 %v82, 4294967272
      %v300 = vlaneseq
      %v301 = vshrl.u32 %v300, 7
      %v302 = vsub.s32 %v299, %v301
      %v303 = vrot.slane %v244, %v302
      %vm304 = vcmask 261312
      %v305 = vsel %vm304, %v303, %v298
      %v306 = vadd.s32 %v82, 4294967264
      %v307 = vlaneseq
      %v308 = vshrl.u32 %v307, 7
      %v309 = vsub.s32 %v306, %v308
      %v310 = vrot.slane %v245, %v309
      %vm311 = vcmask 326912
      %v312 = vsel %vm311, %v310, %v305
      %v313 = vadd.s32 %v82, 4294967256
      %v314 = vlaneseq
      %v315 = vshrl.u32 %v314, 7
      %v316 = vsub.s32 %v313, %v315
      %v317 = vrot.slane %v246, %v316
      %vm318 = vcmask 392512
      %v319 = vsel %vm318, %v317, %v312
      %v320 = vadd.s32 %v82, 4294967248
      %v321 = vlaneseq
      %v322 = vshrl.u32 %v321, 7
      %v323 = vsub.s32 %v320, %v322
      %v324 = vrot.slane %v247, %v323
      %vm325 = vcmask 458112
      %v326 = vsel %vm325, %v324, %v319
      %v327 = vadd.s32 %v82, 4294967240
      %v328 = vlaneseq
      %v329 = vshrl.u32 %v328, 7
      %v330 = vsub.s32 %v327, %v329
      %v331 = vrot.slane %v248, %v330
      %vm332 = vcmask 523712
      %v333 = vsel %vm332, %v331, %v326
      %v334 = vlaneseq
      %v335 = vshrl.u32 %v334, 7
      %v336 = vsub.s32 %v82, %v335
      %v337 = vrot.slane %v249, %v336
      %v338 = vlaneseq
      %v339 = vshrl.u32 %v338, 7
      %v340 = vsub.s32 %v285, %v339
      %v341 = vrot.slane %v250, %v340
      %v342 = vsel %vm290, %v341, %v337
      %v343 = vlaneseq
      %v344 = vshrl.u32 %v343, 7
      %v345 = vsub.s32 %v292, %v344
      %v346 = vrot.slane %v251, %v345
      %v347 = vsel %vm297, %v346, %v342
      %v348 = vlaneseq
      %v349 = vshrl.u32 %v348, 7
      %v350 = vsub.s32 %v299, %v349
      %v351 = vrot.slane %v252, %v350
      %v352 = vsel %vm304, %v351, %v347
      %v353 = vlaneseq
      %v354 = vshrl.u32 %v353, 7
      %v355 = vsub.s32 %v306, %v354
      %v356 = vrot.slane %v253, %v355
      %v357 = vsel %vm311, %v356, %v352
      %v358 = vlaneseq
      %v359 = vshrl.u32 %v358, 7
      %v360 = vsub.s32 %v313, %v359
      %v361 = vrot.slane %v254, %v360
      %v362 = vsel %vm318, %v361, %v357
      %v363 = vlaneseq
      %v364 = vshrl.u32 %v363, 7
      %v365 = vsub.s32 %v320, %v364
      %v366 = vrot.slane %v255, %v365
      %v367 = vsel %vm325, %v366, %v362
      %v368 = vlaneseq
      %v369 = vshrl.u32 %v368, 7
      %v370 = vsub.s32 %v327, %v369
      %v371 = vrot.slane %v256, %v370
      %v372 = vsel %vm332, %v371, %v367
      %vm373 = vcmask 1041409
      %v374 = vsel %vm373, %v372, %v333
      %vm375 = vcmask 523264
      %v376 = vsel %vm375, %v374, 0
      %378 = vmatprep.subr.mxu0 0.0
      %379 = vmatpush1.msra.mxu0 0.0
      %380 = vmatprep.subr.mxu0 0.0
      %381 = vmatpush1.msra.mxu0 0.0
      %382 = vmatprep.subr.mxu0 0.0
      %383 = vmatpush1.msra.mxu0 0.0
      %384 = vmatprep.subr.mxu0 0.0
      %385 = vmatpush1.msra.mxu0 0.0
      %386 = vmatprep.subr.mxu0 0.0
      %387 = vmatpush1.msra.mxu0 0.0
      %388 = vmatprep.subr.mxu0 0.0
      %389 = vmatpush1.msra.mxu0 0.0
      %390 = vmatprep.subr.mxu0 0.0
      %391 = vmatpush1.msra.mxu0 0.0
      %392 = vmatprep.subr.mxu0 0.0
      %393 = vmatpush1.msra.mxu0 0.0
      %394 = vmatprep.subr.mxu0 0.0
      %395 = vmatpush1.msra.mxu0 %v264
      %396 = vmatprep.subr.mxu0 0.0
      %397 = vmatpush1.msra.mxu0 %v263
      %398 = vmatprep.subr.mxu0 0.0
      %399 = vmatpush1.msra.mxu0 %v262
      %400 = vmatprep.subr.mxu0 0.0
      %401 = vmatpush1.msra.mxu0 %v261
      %402 = vmatprep.subr.mxu0 0.0
      %403 = vmatpush1.msra.mxu0 %v260
      %404 = vmatprep.subr.mxu0 0.0
      %405 = vmatpush1.msra.mxu0 %v259
      %406 = vmatprep.subr.mxu0 0.0
      %407 = vmatpush1.msra.mxu0 %v258
      %408 = vmatprep.subr.mxu0 0.0
      %409 = vmatpush1.msra.mxu0 %v257
      %410 = vmatprep.subr.mxu0 0.0
      %411 = vmatpush2.msra.mxu0 0.0
      %412 = vmatprep.subr.mxu0 0.0
      %413 = vmatpush2.msra.mxu0 0.0
      %414 = vmatprep.subr.mxu0 0.0
      %415 = vmatpush2.msra.mxu0 0.0
      %416 = vmatprep.subr.mxu0 0.0
      %417 = vmatpush2.msra.mxu0 0.0
      %418 = vmatprep.subr.mxu0 0.0
      %419 = vmatpush2.msra.mxu0 0.0
      %420 = vmatprep.subr.mxu0 0.0
      %421 = vmatpush2.msra.mxu0 0.0
      %422 = vmatprep.subr.mxu0 0.0
      %423 = vmatpush2.msra.mxu0 0.0
      %424 = vmatprep.subr.mxu0 0.0
      %425 = vmatpush2.msra.mxu0 0.0
      %426 = vmatprep.subr.mxu0 0.0
      %427 = vmatpush2.msra.mxu0 0.0
      %428 = vmatprep.subr.mxu0 0.0
      %429 = vmatpush2.msra.mxu0 0.0
      %430 = vmatprep.subr.mxu0 0.0
      %431 = vmatpush2.msra.mxu0 0.0
      %432 = vmatprep.subr.mxu0 0.0
      %433 = vmatpush2.msra.mxu0 0.0
      %434 = vmatprep.subr.mxu0 0.0
      %435 = vmatpush2.msra.mxu0 0.0
      %436 = vmatprep.subr.mxu0 0.0
      %437 = vmatpush2.msra.mxu0 0.0
      %438 = vmatprep.subr.mxu0 0.0
      %439 = vmatpush2.msra.mxu0 0.0
      %440 = vmatprep.subr.mxu0 0.0
      %441 = vmatpush2.msra.mxu0 0.0
      %442 = vmatprep.mubr.f32.mxu0 0.0
      %443 = vmatmul.mubr.f32.gmra.mxu0 %v376
      %v444 = vpop.f32.mrf.mxu0
      %v445 = vadd.f32 0.0, %v444
      %v446 = vpop.f32.mrf.mxu0
      %447 = vdwg.mxu0
      %v448 = vmax.f32 %v445, 0.0
      %v449 = vld [vmem:[%s2] sm:$0xf]
      %vm450 = vcmask 31744
      %v452 = vsel %vm450, %v448, 0
      %vm454 = vcmask 1043456
      %v456 = vsel %vm454, %v449, 0
      %458 = vmatprep.subr.mxu0 0.0
      %459 = vmatpush1.msra.mxu0 0.0
      %460 = vmatprep.subr.mxu0 0.0
      %461 = vmatpush1.msra.mxu0 0.0
      %462 = vmatprep.subr.mxu0 0.0
      %463 = vmatpush1.msra.mxu0 0.0
      %464 = vmatprep.subr.mxu0 0.0
      %465 = vmatpush1.msra.mxu0 0.0
      %466 = vmatprep.subr.mxu0 0.0
      %467 = vmatpush1.msra.mxu0 0.0
      %468 = vmatprep.subr.mxu0 0.0
      %469 = vmatpush1.msra.mxu0 0.0
      %470 = vmatprep.subr.mxu0 0.0
      %471 = vmatpush1.msra.mxu0 0.0
      %472 = vmatprep.subr.mxu0 0.0
      %473 = vmatpush1.msra.mxu0 0.0
      %474 = vmatprep.subr.mxu0 0.0
      %475 = vmatpush1.msra.mxu0 0.0
      %476 = vmatprep.subr.mxu0 0.0
      %477 = vmatpush1.msra.mxu0 0.0
      %478 = vmatprep.subr.mxu0 0.0
      %479 = vmatpush1.msra.mxu0 0.0
      %480 = vmatprep.subr.mxu0 0.0
      %481 = vmatpush1.msra.mxu0 0.0
      %482 = vmatprep.subr.mxu0 0.0
      %483 = vmatpush1.msra.mxu0 0.0
      %484 = vmatprep.subr.mxu0 0.0
      %485 = vmatpush1.msra.mxu0 0.0
      %486 = vmatprep.subr.mxu0 0.0
      %487 = vmatpush1.msra.mxu0 0.0
      %488 = vmatprep.subr.mxu0 0.0
      %489 = vmatpush1.msra.mxu0 %v456
      %490 = vmatprep.subr.mxu0 0.0
      %491 = vmatpush2.msra.mxu0 0.0
      %492 = vmatprep.subr.mxu0 0.0
      %493 = vmatpush2.msra.mxu0 0.0
      %494 = vmatprep.subr.mxu0 0.0
      %495 = vmatpush2.msra.mxu0 0.0
      %496 = vmatprep.subr.mxu0 0.0
      %497 = vmatpush2.msra.mxu0 0.0
      %498 = vmatprep.subr.mxu0 0.0
      %499 = vmatpush2.msra.mxu0 0.0
      %500 = vmatprep.subr.mxu0 0.0
      %501 = vmatpush2.msra.mxu0 0.0
      %502 = vmatprep.subr.mxu0 0.0
      %503 = vmatpush2.msra.mxu0 0.0
      %504 = vmatprep.subr.mxu0 0.0
      %505 = vmatpush2.msra.mxu0 0.0
      %506 = vmatprep.subr.mxu0 0.0
      %507 = vmatpush2.msra.mxu0 0.0
      %508 = vmatprep.subr.mxu0 0.0
      %509 = vmatpush2.msra.mxu0 0.0
      %510 = vmatprep.subr.mxu0 0.0
      %511 = vmatpush2.msra.mxu0 0.0
      %512 = vmatprep.subr.mxu0 0.0
      %513 = vmatpush2.msra.mxu0 0.0
      %514 = vmatprep.subr.mxu0 0.0
      %515 = vmatpush2.msra.mxu0 0.0
      %516 = vmatprep.subr.mxu0 0.0
      %517 = vmatpush2.msra.mxu0 0.0
      %518 = vmatprep.subr.mxu0 0.0
      %519 = vmatpush2.msra.mxu0 0.0
      %520 = vmatprep.subr.mxu0 0.0
      %521 = vmatpush2.msra.mxu0 0.0
      %522 = vmatprep.mubr.f32.mxu0 0.0
      %523 = vmatmul.mubr.f32.gmra.mxu0 %v452
      %v524 = vpop.f32.mrf.mxu0
      %v525 = vadd.f32 0.0, %v524
      %v526 = vpop.f32.mrf.mxu0
      %527 = vdwg.mxu0
      %v528 = vxor.u32 %v525, 2147483648
      %v529 = vmul.f32 %v528, 1.442695
      %v530 = vpow.pop %v529
      %v531 = vadd.f32 %v530, 1.0
      %v532 = vrcp.pop %v531
      %v533 = vmul.f32 1.0, %v532
      %vm534 = vcmask 517120
      %535 = vst.msk [vmem:[#allocation6] sm:$0x3] %vm534, %v533
    $region25: #{tpu_custom_call.1} parent=1 // pred_fallthru
      _
    // Predicated region
    $region26: #{tpu_custom_call.1} parent=1 // pred_check
      _
    $region27: #{tpu_custom_call.1} parent=1 // pred_check_branch
      %537 = sbr.rel (0) target = $region29
    $region28: #{tpu_custom_call.1} parent=1 // pred_region
      %s539 = ssub.s32 32, 32
      %540 = vsyncadd [#allocation5], %s539
      %s542 = sshll.u32 [#allocation6], 4
      %s543 = int_to_ptr.vmem [resolvable:$true] %s542
      %545 = dma.vmem_to_hbm [thread:$0]  %s543, 32, %s3, [#allocation5]
    $region29: #{tpu_custom_call.1} parent=1 // pred_fallthru
      _
    // Predicated region
    $region30: #{tpu_custom_call.1} parent=1 // pred_check
      _
    $region31: #{tpu_custom_call.1} parent=1 // pred_check_branch
      %547 = sbr.rel (0) target = $region33
    $region32: #{tpu_custom_call.1} parent=1 // pred_region
      %548 = dma.done [#allocation5], 32
    $region33: #{tpu_custom_call.1} parent=1 // pred_fallthru
      _
    %549 = vsyncpa [#allocation4], 1
    %550 = vsyncpa [#allocation5], 1

</llo_original>
